<compile_context>
chip_gen: v7x
topology: tpu7x:2x2x1
jax: 0.10.0
libtpu: 0.0.40
codegen_flags: <defaults>
</compile_context>

<pallas_src>
import jax
import jax.numpy as jnp
from jax.experimental import pallas as pl
from jax.experimental.pallas import tpu as pltpu


def _mlp_kernel(x_ref, w1_ref, b1_ref, w2_ref, b2_ref, o_ref):
    # fc1: bf16 x bf16 on the MXU, f32 accumulation.
    h = jnp.dot(x_ref[...], w1_ref[...], preferred_element_type=jnp.float32)
    # bias + tanh epilogue in f32 (VPU/EUP); b1 is (1, hidden) -> broadcast over rows.
    h = jnp.tanh(h + b1_ref[...])
    # dropout (eval mode) == identity
    # fc2: cast the activation back to bf16 for the MXU, accumulate in f32.
    y = jnp.dot(h.astype(w2_ref.dtype), w2_ref[...], preferred_element_type=jnp.float32)
    o_ref[...] = (y + b2_ref[...]).astype(o_ref.dtype)


def simple_model_forward(x, w1_t, b1, w2_t, b2, *, tile_b=256):
    """x: [B, in_f]; w1_t: [in_f, hidden]; b1: [hidden]; w2_t: [hidden, out_f]; b2: [out_f].

    Returns (out, None, 0.0) matching the PyTorch module's forward signature.
    """
    B, in_f = x.shape
    hidden = w1_t.shape[1]
    out_f = w2_t.shape[1]

    # --- shape plumbing ---------------------------------------------------------
    # Lane-dense output: pad out_features up to a multiple of 128 (unmasked stores).
    out_pad = ((out_f + 127) // 128) * 128
    # Batch tile: multiple of 16 (bf16 sublane packing); shrink for tiny batches.
    if B < tile_b:
        tile_b = max(16, ((B + 15) // 16) * 16)
    B_pad = ((B + tile_b - 1) // tile_b) * tile_b
    num_tiles = B_pad // tile_b

    # bf16 matmul operands (halves HBM/VMEM traffic, native MXU dtype); f32 biases.
    xb = x.astype(jnp.bfloat16)
    if B_pad != B:
        xb = jnp.pad(xb, ((0, B_pad - B), (0, 0)))
    w1b = w1_t.astype(jnp.bfloat16)
    w2b = jnp.pad(w2_t, ((0, 0), (0, out_pad - out_f))).astype(jnp.bfloat16)
    b1r = b1.reshape(1, hidden).astype(jnp.float32)
    b2r = jnp.pad(b2, (0, out_pad - out_f)).reshape(1, out_pad).astype(jnp.float32)

    # --- cost hint for XLA's scheduler -----------------------------------------
    cost = pl.CostEstimate(
        flops=2 * B_pad * (in_f * hidden + hidden * out_pad),
        transcendentals=B_pad * hidden,
        bytes_accessed=(
            B_pad * in_f * 2            # x (bf16)
            + in_f * hidden * 2         # w1 (bf16)
            + hidden * out_pad * 2      # w2 (bf16)
            + (hidden + out_pad) * 4    # biases (f32)
            + B_pad * out_pad * 4       # output (f32)
        ),
    )

    out = pl.pallas_call(
        _mlp_kernel,
        out_shape=jax.ShapeDtypeStruct((B_pad, out_pad), x.dtype),
        grid_spec=pl.GridSpec(
            grid=(num_tiles,),
            in_specs=[
                # streamed (double-buffered) across the batch axis
                pl.BlockSpec((tile_b, in_f), lambda i: (i, 0)),
                # weights / biases: constant index_map -> VMEM-resident across steps
                pl.BlockSpec((in_f, hidden), lambda i: (0, 0)),
                pl.BlockSpec((1, hidden), lambda i: (0, 0)),
                pl.BlockSpec((hidden, out_pad), lambda i: (0, 0)),
                pl.BlockSpec((1, out_pad), lambda i: (0, 0)),
            ],
            out_specs=pl.BlockSpec((tile_b, out_pad), lambda i: (i, 0)),
        ),
        compiler_params=pltpu.CompilerParams(
            dimension_semantics=("parallel",),       # shard batch tiles across TCs (v7x)
            vmem_limit_bytes=32 * 1024 * 1024,       # explicit budget, safe on v7x's 64 MiB
        ),
        cost_estimate=cost,
    )(xb, w1b, b1r, w2b, b2r)

    # Strip batch + lane padding back to the module's logical output shape.
    out = out[:B, :out_f]
    return (out, None, 0.0)


def init_params(key, in_features, hidden, out_features, dtype=jnp.float32):
    """Deterministic init mimicking nn.Linear's U(-1/sqrt(fan_in), 1/sqrt(fan_in))."""
    k1, k2, k3, k4 = jax.random.split(key, 4)
    bound1 = 1.0 / (in_features ** 0.5)
    bound2 = 1.0 / (hidden ** 0.5)
    # PyTorch stores weight as (out, in); we build the transposed (in, out) directly.
    w1_t = jax.random.uniform(k1, (in_features, hidden), dtype, -bound1, bound1)
    b1 = jax.random.uniform(k2, (hidden,), dtype, -bound1, bound1)
    w2_t = jax.random.uniform(k3, (hidden, out_features), dtype, -bound2, bound2)
    b2 = jax.random.uniform(k4, (out_features,), dtype, -bound2, bound2)
    return w1_t, b1, w2_t, b2


if __name__ == "__main__":
    in_features, hidden, out_features = 32, 64, 16
    batch = 512          # 2 batch tiles of 256 -> real pipelining / both v7x cores
    tile_b = 256

    key = jax.random.PRNGKey(0)
    k_x, k_p = jax.random.split(key)
    x = jax.random.normal(k_x, (batch, in_features), jnp.float32)
    w1_t, b1, w2_t, b2 = init_params(k_p, in_features, hidden, out_features)

    out, aux, scalar = simple_model_forward(x, w1_t, b1, w2_t, b2, tile_b=tile_b)
    out = jax.block_until_ready(out)

    # Sanity check against a pure-JAX f32 reference (loosened tolerance: bf16 matmuls).
    ref = jnp.tanh(x @ w1_t + b1) @ w2_t + b2
    assert out.shape == (batch, out_features)
    assert aux is None and scalar == 0.0
    assert jnp.allclose(out, ref, atol=5e-2, rtol=5e-2), float(jnp.max(jnp.abs(out - ref)))

    print("KERNEL_OK")
</pallas_src>

<mosaic_0001>
module attributes {stable_mosaic.version = 11 : i64} {
  func.func @_mlp_kernel(%arg0: i32, %arg1: memref<256x32xbf16, #tpu.memory_space<vmem>>, %arg2: memref<32x64xbf16, #tpu.memory_space<vmem>>, %arg3: memref<1x64xf32, #tpu.memory_space<vmem>>, %arg4: memref<64x128xbf16, #tpu.memory_space<vmem>>, %arg5: memref<1x128xf32, #tpu.memory_space<vmem>>, %arg6: memref<256x128xf32, #tpu.memory_space<vmem>>) attributes {dimension_semantics = [#tpu.dimension_semantics<parallel>], iteration_bounds = array<i64: 2>, scalar_prefetch = 0 : i64, scratch_operands = 0 : i64, tpu.core_type = #tpu.core_type<tc>, window_params = [{transform_indices = @transform_0, window_bounds = array<i64: 256, 32>}, {pipeline_mode = #tpu.pipeline_mode<synchronous>, transform_indices = @transform_1, window_bounds = array<i64: 32, 64>}, {pipeline_mode = #tpu.pipeline_mode<synchronous>, transform_indices = @transform_2, window_bounds = array<i64: 1, 64>}, {pipeline_mode = #tpu.pipeline_mode<synchronous>, transform_indices = @transform_3, window_bounds = array<i64: 64, 128>}, {pipeline_mode = #tpu.pipeline_mode<synchronous>, transform_indices = @transform_4, window_bounds = array<i64: 1, 128>}, {transform_indices = @transform_5, window_bounds = array<i64: 256, 128>}]} {
    %c0 = arith.constant 0 : index
    %c0_0 = arith.constant 0 : index
    %0 = vector.load %arg1[%c0, %c0_0] : memref<256x32xbf16, #tpu.memory_space<vmem>>, vector<256x32xbf16>
    %c0_1 = arith.constant 0 : index
    %c0_2 = arith.constant 0 : index
    %1 = vector.load %arg2[%c0_1, %c0_2] : memref<32x64xbf16, #tpu.memory_space<vmem>>, vector<32x64xbf16>
    %cst = arith.constant dense<0.000000e+00> : vector<256x64xf32>
    %2 = tpu.matmul %0, %1, %cst {dimension_numbers = #tpu.dot_dimension_numbers<[1], [0], [0], [1], [0, 0, 1, 1], [], []>} : vector<256x32xbf16>, vector<32x64xbf16>, vector<256x64xf32> -> vector<256x64xf32>
    %c0_3 = arith.constant 0 : index
    %c0_4 = arith.constant 0 : index
    %3 = vector.load %arg3[%c0_3, %c0_4] : memref<1x64xf32, #tpu.memory_space<vmem>>, vector<1x64xf32>
    %4 = vector.broadcast %3 : vector<1x64xf32> to vector<256x64xf32>
    %5 = arith.addf %2, %4 : vector<256x64xf32>
    %6 = math.tanh %5 : vector<256x64xf32>
    %7 = arith.truncf %6 : vector<256x64xf32> to vector<256x64xbf16>
    %c0_5 = arith.constant 0 : index
    %c0_6 = arith.constant 0 : index
    %8 = vector.load %arg4[%c0_5, %c0_6] : memref<64x128xbf16, #tpu.memory_space<vmem>>, vector<64x128xbf16>
    %cst_7 = arith.constant dense<0.000000e+00> : vector<256x128xf32>
    %9 = tpu.matmul %7, %8, %cst_7 {dimension_numbers = #tpu.dot_dimension_numbers<[1], [0], [0], [1], [0, 0, 1, 1], [], []>} : vector<256x64xbf16>, vector<64x128xbf16>, vector<256x128xf32> -> vector<256x128xf32>
    %c0_8 = arith.constant 0 : index
    %c0_9 = arith.constant 0 : index
    %10 = vector.load %arg5[%c0_8, %c0_9] : memref<1x128xf32, #tpu.memory_space<vmem>>, vector<1x128xf32>
    %11 = vector.broadcast %10 : vector<1x128xf32> to vector<256x128xf32>
    %12 = arith.addf %9, %11 : vector<256x128xf32>
    %c0_10 = arith.constant 0 : index
    %c0_11 = arith.constant 0 : index
    %13 = vector.load %arg6[%c0_10, %c0_11] : memref<256x128xf32, #tpu.memory_space<vmem>>, vector<256x128xf32>
    tpu.vector_store %arg6[%c0_10, %c0_11], %12 {strides = array<i32>} : memref<256x128xf32, #tpu.memory_space<vmem>>, vector<256x128xf32>,
    return
  }
  func.func @transform_0(%arg0: i32) -> (i32, i32) {
    %c0_i32 = arith.constant 0 : i32
    %c0_i32_0 = arith.constant 0 : i32
    return %arg0, %c0_i32 : i32, i32
  }
  func.func @transform_1(%arg0: i32) -> (i32, i32) {
    %c0_i32 = arith.constant 0 : i32
    %c0_i32_0 = arith.constant 0 : i32
    %c0_i32_1 = arith.constant 0 : i32
    return %c0_i32, %c0_i32_0 : i32, i32
  }
  func.func @transform_2(%arg0: i32) -> (i32, i32) {
    %c0_i32 = arith.constant 0 : i32
    %c0_i32_0 = arith.constant 0 : i32
    %c0_i32_1 = arith.constant 0 : i32
    return %c0_i32, %c0_i32_0 : i32, i32
  }
  func.func @transform_3(%arg0: i32) -> (i32, i32) {
    %c0_i32 = arith.constant 0 : i32
    %c0_i32_0 = arith.constant 0 : i32
    %c0_i32_1 = arith.constant 0 : i32
    return %c0_i32, %c0_i32_0 : i32, i32
  }
  func.func @transform_4(%arg0: i32) -> (i32, i32) {
    %c0_i32 = arith.constant 0 : i32
    %c0_i32_0 = arith.constant 0 : i32
    %c0_i32_1 = arith.constant 0 : i32
    return %c0_i32, %c0_i32_0 : i32, i32
  }
  func.func @transform_5(%arg0: i32) -> (i32, i32) {
    %c0_i32 = arith.constant 0 : i32
    %c0_i32_0 = arith.constant 0 : i32
    return %arg0, %c0_i32 : i32, i32
  }
}

</mosaic_0001>

<llo_original>
// kernel: tpu_custom_call.1
$region0: #{tpu_custom_call.1}
  #allocation0 [shape = 'u32[]', space=smem, size = 0x4, offset = 0x4, fixed_abs, tag = 'smem constant byte address 0x4 - core index']
  #allocation1 [shape = 'u32[144,128]{1,0:T(1,128)}', space=vmem, size = 0x12000, scoped, tag = 'internal scratch']
  %s0 = inlined_call_operand.vmem [shape: bf16[512,32], index: 0, kind: input, shape index: {}]
  %s1 = inlined_call_operand.vmem [shape: bf16[32,64], index: 1, kind: input, shape index: {}]
  %s2 = inlined_call_operand.vmem [shape: f32[1,64], index: 2, kind: input, shape index: {}]
  %s3 = inlined_call_operand.vmem [shape: bf16[64,128], index: 3, kind: input, shape index: {}]
  %s4 = inlined_call_operand.vmem [shape: f32[1,128], index: 4, kind: input, shape index: {}]
  %s5 = inlined_call_operand.hbm [shape: f32[512,128], index: 5, kind: output, shape index: {}]
  %s6 = sld [smem:[#allocation0]]
  $region53: #{tpu_custom_call.1} parent=0
    _
  %s8 = ssub.s32 1, %s6
  %s9 = scalar_select 0, %s8, %s6
  $region1: #{tpu_custom_call.1} parent=0
    #allocation2 [shape = 'u8[262144]{0}', space=vmem, size = 0x40000, scoped, tag = 'output window, operand 0']
    #allocation3 [shape = 's32[2]{0}', space=sflag, size = 0x8, scoped, tag = 'scoped memory for tpu_custom_call.1']
    %10 = vsyncpa [#allocation3], 0
    %s11 = scalar_lea.sflag [#allocation3], 1
    %12 = vsyncpa %s11, 0
    loop: start=0, step=1, limit=4
    $region2: #{tpu_custom_call.1} parent=1 // loop_pre_header
      _
    $region3: #{tpu_custom_call.1} parent=1 // loop_header
      %s14 = sphi 0, %s18
      %p15 = scmp.ge.s32.totalorder %s14, 4
      %s24 = sphi 0, %s26
      %s27 = sphi 0, %s24
      %s28 = sphi 0, %s27
      %s44 = sphi 0, %s28
      %s48 = sphi 0, %s48
      %s50 = sphi 0, %s48
      %s51 = sphi 0, %s50
      %s65 = sphi 0, %s51
      %s69 = sphi 0, %s69
      %s71 = sphi 0, %s69
      %s72 = sphi 0, %s71
      %s86 = sphi 0, %s72
      %s90 = sphi 0, %s90
      %s92 = sphi 0, %s90
      %s93 = sphi 0, %s92
      %s107 = sphi 0, %s93
      %s111 = sphi 0, %s111
      %s113 = sphi 0, %s111
      %s114 = sphi 0, %s113
      %s128 = sphi 0, %s114
      %s134 = sphi 0, %s136
      %s137 = sphi 0, %s134
      %s138 = sphi 0, %s137
      %s154 = sphi 0, %s138
    $region4: #{tpu_custom_call.1} parent=1 // loop_header_branch
      %17 = sbr.rel (%p15) target = $region8
    $region5: #{tpu_custom_call.1} parent=1 // loop_body
      %s19 = ssub.s32 %s14, 1
      %s20 = ssub.s32 %s14, 2
      %s21 = sadd.s32 %s14, 1
      %s22 = ssub.s32 %s14, %s21
      %p23 = scmp.eq.s32.totalorder %s22, 0
      %s25 = sadd.s32 %s24, 1
      %s26 = scalar_select %p23, %s24, %s25
      %p29 = pneg %p23
      %p30 = scmp.eq.s32.totalorder %s14, 1
      %p31 = por %p29, %p30
      %p32 = scmp.ne.s32.totalorder %s24, %s27
      %p33 = scmp.eq.s32.totalorder %s14, 0
      %p34 = por %p32, %p33
      %p35 = scmp.ne.s32.totalorder %s24, %s27
      %p36 = scmp.eq.s32.totalorder %s19, 1
      %p37 = por %p35, %p36
      %p38 = scmp.ne.s32.totalorder %s27, %s28
      %p39 = scmp.eq.s32.totalorder %s19, 0
      %p40 = por %p38, %p39
      %p41 = scmp.ne.s32.totalorder %s27, %s28
      %p42 = scmp.eq.s32.totalorder %s20, 1
      %p43 = por %p41, %p42
      %p45 = scmp.ne.s32.totalorder %s28, %s44
      %p46 = scmp.eq.s32.totalorder %s20, 0
      %p47 = por %p45, %p46
      %s49 = sadd.s32 %s48, 1
      %p52 = scmp.eq.s32.totalorder %s14, 1
      %p53 = scmp.ne.s32.totalorder %s48, %s50
      %p54 = scmp.eq.s32.totalorder %s14, 0
      %p55 = por %p53, %p54
      %p56 = scmp.ne.s32.totalorder %s48, %s50
      %p57 = scmp.eq.s32.totalorder %s19, 1
      %p58 = por %p56, %p57
      %p59 = scmp.ne.s32.totalorder %s50, %s51
      %p60 = scmp.eq.s32.totalorder %s19, 0
      %p61 = por %p59, %p60
      %p62 = scmp.ne.s32.totalorder %s50, %s51
      %p63 = scmp.eq.s32.totalorder %s20, 1
      %p64 = por %p62, %p63
      %p66 = scmp.ne.s32.totalorder %s51, %s65
      %p67 = scmp.eq.s32.totalorder %s20, 0
      %p68 = por %p66, %p67
      %s70 = sadd.s32 %s69, 1
      %p73 = scmp.eq.s32.totalorder %s14, 1
      %p74 = scmp.ne.s32.totalorder %s69, %s71
      %p75 = scmp.eq.s32.totalorder %s14, 0
      %p76 = por %p74, %p75
      %p77 = scmp.ne.s32.totalorder %s69, %s71
      %p78 = scmp.eq.s32.totalorder %s19, 1
      %p79 = por %p77, %p78
      %p80 = scmp.ne.s32.totalorder %s71, %s72
      %p81 = scmp.eq.s32.totalorder %s19, 0
      %p82 = por %p80, %p81
      %p83 = scmp.ne.s32.totalorder %s71, %s72
      %p84 = scmp.eq.s32.totalorder %s20, 1
      %p85 = por %p83, %p84
      %p87 = scmp.ne.s32.totalorder %s72, %s86
      %p88 = scmp.eq.s32.totalorder %s20, 0
      %p89 = por %p87, %p88
      %s91 = sadd.s32 %s90, 1
      %p94 = scmp.eq.s32.totalorder %s14, 1
      %p95 = scmp.ne.s32.totalorder %s90, %s92
      %p96 = scmp.eq.s32.totalorder %s14, 0
      %p97 = por %p95, %p96
      %p98 = scmp.ne.s32.totalorder %s90, %s92
      %p99 = scmp.eq.s32.totalorder %s19, 1
      %p100 = por %p98, %p99
      %p101 = scmp.ne.s32.totalorder %s92, %s93
      %p102 = scmp.eq.s32.totalorder %s19, 0
      %p103 = por %p101, %p102
      %p104 = scmp.ne.s32.totalorder %s92, %s93
      %p105 = scmp.eq.s32.totalorder %s20, 1
      %p106 = por %p104, %p105
      %p108 = scmp.ne.s32.totalorder %s93, %s107
      %p109 = scmp.eq.s32.totalorder %s20, 0
      %p110 = por %p108, %p109
      %s112 = sadd.s32 %s111, 1
      %p115 = scmp.eq.s32.totalorder %s14, 1
      %p116 = scmp.ne.s32.totalorder %s111, %s113
      %p117 = scmp.eq.s32.totalorder %s14, 0
      %p118 = por %p116, %p117
      %p119 = scmp.ne.s32.totalorder %s111, %s113
      %p120 = scmp.eq.s32.totalorder %s19, 1
      %p121 = por %p119, %p120
      %p122 = scmp.ne.s32.totalorder %s113, %s114
      %p123 = scmp.eq.s32.totalorder %s19, 0
      %p124 = por %p122, %p123
      %p125 = scmp.ne.s32.totalorder %s113, %s114
      %p126 = scmp.eq.s32.totalorder %s20, 1
      %p127 = por %p125, %p126
      %p129 = scmp.ne.s32.totalorder %s114, %s128
      %p130 = scmp.eq.s32.totalorder %s20, 0
      %p131 = por %p129, %p130
      %s132 = ssub.s32 %s14, %s21
      %p133 = scmp.eq.s32.totalorder %s132, 0
      %s135 = sadd.s32 %s134, 1
      %s136 = scalar_select %p133, %s134, %s135
      %p139 = pneg %p133
      %p140 = scmp.eq.s32.totalorder %s14, 1
      %p141 = por %p139, %p140
      %p142 = scmp.ne.s32.totalorder %s134, %s137
      %p143 = scmp.eq.s32.totalorder %s14, 0
      %p144 = por %p142, %p143
      %p145 = scmp.ne.s32.totalorder %s134, %s137
      %p146 = scmp.eq.s32.totalorder %s19, 1
      %p147 = por %p145, %p146
      %p148 = scmp.ne.s32.totalorder %s137, %s138
      %p149 = scmp.eq.s32.totalorder %s19, 0
      %p150 = por %p148, %p149
      %p151 = scmp.ne.s32.totalorder %s137, %s138
      %p152 = scmp.eq.s32.totalorder %s20, 1
      %p153 = por %p151, %p152
      %p155 = scmp.ne.s32.totalorder %s138, %s154
      %p156 = scmp.eq.s32.totalorder %s20, 0
      %p157 = por %p155, %p156
      %p158 = scmp.le.s32.totalorder 1, %s14
      %p159 = scmp.lt.s32.totalorder %s14, 3
      %p160 = pnand %p158, %p159
      %p161 = pneg %p160
      // Predicated region
      $region9: #{tpu_custom_call.1} parent=5 // pred_check
        _
      $region10: #{tpu_custom_call.1} parent=5 // pred_check_branch
        %163 = sbr.rel (%p160) target = $region12
      $region11: #{tpu_custom_call.1} parent=5 // pred_region
        %s164 = ssub.s32 %s14, 1
        // Predicated region
        $region13: #{tpu_custom_call.1} parent=11 // pred_check
          %p165 = pneg %p61
        $region14: #{tpu_custom_call.1} parent=11 // pred_check_branch
          %167 = sbr.rel (%p165) target = $region16
        $region15: #{tpu_custom_call.1} parent=11 // pred_region
          _
        $region16: #{tpu_custom_call.1} parent=11 // pred_fallthru
          _
        // Predicated region
        $region17: #{tpu_custom_call.1} parent=11 // pred_check
          %p168 = pneg %p82
        $region18: #{tpu_custom_call.1} parent=11 // pred_check_branch
          %170 = sbr.rel (%p168) target = $region20
        $region19: #{tpu_custom_call.1} parent=11 // pred_region
          _
        $region20: #{tpu_custom_call.1} parent=11 // pred_fallthru
          _
        // Predicated region
        $region21: #{tpu_custom_call.1} parent=11 // pred_check
          %p171 = pneg %p103
        $region22: #{tpu_custom_call.1} parent=11 // pred_check_branch
          %173 = sbr.rel (%p171) target = $region24
        $region23: #{tpu_custom_call.1} parent=11 // pred_region
          _
        $region24: #{tpu_custom_call.1} parent=11 // pred_fallthru
          _
        // Predicated region
        $region25: #{tpu_custom_call.1} parent=11 // pred_check
          %p174 = pneg %p124
        $region26: #{tpu_custom_call.1} parent=11 // pred_check_branch
          %176 = sbr.rel (%p174) target = $region28
        $region27: #{tpu_custom_call.1} parent=11 // pred_region
          _
        $region28: #{tpu_custom_call.1} parent=11 // pred_fallthru
          _
      $region12: #{tpu_custom_call.1} parent=5 // pred_fallthru
        _
      %p177 = scmp.lt.s32.totalorder %s14, 2
      // Predicated region
      $region29: #{tpu_custom_call.1} parent=5 // pred_check
        %p178 = pneg %p177
      $region30: #{tpu_custom_call.1} parent=5 // pred_check_branch
        %180 = sbr.rel (%p178) target = $region32
      $region31: #{tpu_custom_call.1} parent=5 // pred_region
        // Predicated region
        $region33: #{tpu_custom_call.1} parent=31 // pred_check
          %p181 = pneg %p34
        $region34: #{tpu_custom_call.1} parent=31 // pred_check_branch
          %183 = sbr.rel (%p181) target = $region36
        $region35: #{tpu_custom_call.1} parent=31 // pred_region
          %s184 = smul.u32 32, %s14
          %p185 = scmp.lt.s32.totalorder %s184, 63
          %s186 = scalar_select %p185, %s184, 63
          %s187 = smul.addr %s186, 4
          %s188 = scalar_lea.vmem %s0, %s187
          %s189 = smul.u32 32, %s14
        $region36: #{tpu_custom_call.1} parent=31 // pred_fallthru
          _
      $region32: #{tpu_custom_call.1} parent=5 // pred_fallthru
        _
      %p190 = scmp.le.s32.totalorder 1, %s14
      %p191 = scmp.lt.s32.totalorder %s14, 3
      %p192 = pnand %p190, %p191
      %p193 = pneg %p192
      // Predicated region
      $region37: #{tpu_custom_call.1} parent=5 // pred_check
        _
      $region38: #{tpu_custom_call.1} parent=5 // pred_check_branch
        %195 = sbr.rel (%p192) target = $region40
      $region39: #{tpu_custom_call.1} parent=5 // pred_region
        %s196 = ssub.s32 %s14, 1
        %s197 = smul.u32 32, %s19
        %p198 = scmp.lt.s32.totalorder %s197, 63
        %s199 = scalar_select %p198, %s197, 63
        %s200 = smul.addr %s199, 4
        %s201 = scalar_lea.vmem %s0, %s200
        %p202 = pneg %p40
        %p203 = pneg %p37
        %p204 = pneg %p61
        %p205 = pneg %p58
        %p206 = pneg %p82
        %p207 = pneg %p79
        %p208 = pneg %p103
        %p209 = pneg %p100
        %p210 = pneg %p124
        %p211 = pneg %p121
        %p212 = pneg %p150
        %p213 = pneg %p147
        %s214 = sand.u32 %s137, 1
        %s215 = scalar_lea.sflag [#allocation3], %s214
        %s216 = sand.u32 %s137, 1
        %s217 = smul.addr %s216, 256
        %s218 = scalar_lea.vmem [#allocation2], %s217
        %s219 = smul.u32 32, %s19
        %p220 = scmp.lt.s32.totalorder %s219, 63
        %s221 = scalar_select %p220, %s219, 63
        %s222 = smul.addr %s221, 4
        %s223 = scalar_lea.vmem %s0, %s222
        %s224 = smul.u32 32, %s19
        %s225 = smul.u32 32, %s19
        %v227 = vld [vmem:[%s223] sm:$0xf]
        %v228 = vld [vmem:[%s223 + $0x4] sm:$0xf]
        %v229 = vld [vmem:[%s223 + $0x8] sm:$0xf]
        %v230 = vld [vmem:[%s223 + $0xc] sm:$0xf]
        %v231 = vld [vmem:[%s223 + $0x10] sm:$0xf]
        %v232 = vld [vmem:[%s223 + $0x14] sm:$0xf]
        %v233 = vld [vmem:[%s223 + $0x18] sm:$0xf]
        %v234 = vld [vmem:[%s223 + $0x1c] sm:$0xf]
        %v235 = vld [vmem:[%s223 + $0x20] sm:$0xf]
        %v236 = vld [vmem:[%s223 + $0x24] sm:$0xf]
        %v237 = vld [vmem:[%s223 + $0x28] sm:$0xf]
        %v238 = vld [vmem:[%s223 + $0x2c] sm:$0xf]
        %v239 = vld [vmem:[%s223 + $0x30] sm:$0xf]
        %v240 = vld [vmem:[%s223 + $0x34] sm:$0xf]
        %v241 = vld [vmem:[%s223 + $0x38] sm:$0xf]
        %v242 = vld [vmem:[%s223 + $0x3c] sm:$0xf]
        %v243 = vld [vmem:[%s223 + $0x40] sm:$0xf]
        %v244 = vld [vmem:[%s223 + $0x44] sm:$0xf]
        %v245 = vld [vmem:[%s223 + $0x48] sm:$0xf]
        %v246 = vld [vmem:[%s223 + $0x4c] sm:$0xf]
        %v247 = vld [vmem:[%s223 + $0x50] sm:$0xf]
        %v248 = vld [vmem:[%s223 + $0x54] sm:$0xf]
        %v249 = vld [vmem:[%s223 + $0x58] sm:$0xf]
        %v250 = vld [vmem:[%s223 + $0x5c] sm:$0xf]
        %v251 = vld [vmem:[%s223 + $0x60] sm:$0xf]
        %v252 = vld [vmem:[%s223 + $0x64] sm:$0xf]
        %v253 = vld [vmem:[%s223 + $0x68] sm:$0xf]
        %v254 = vld [vmem:[%s223 + $0x6c] sm:$0xf]
        %v255 = vld [vmem:[%s223 + $0x70] sm:$0xf]
        %v256 = vld [vmem:[%s223 + $0x74] sm:$0xf]
        %v257 = vld [vmem:[%s223 + $0x78] sm:$0xf]
        %v258 = vld [vmem:[%s223 + $0x7c] sm:$0xf]
        %v259 = vld [vmem:[%s1] sm:$0xf]
        %v260 = vld [vmem:[%s1 + $0x4] sm:$0xf]
        %v261 = vld [vmem:[%s1 + $0x8] sm:$0xf]
        %v262 = vld [vmem:[%s1 + $0xc] sm:$0xf]
        %v263 = vld [vmem:[%s2] sm:$0x1]
        %v265 = vlaneseq
        %v266 = vshrl.u32 %v265, 7
        %v267 = vsub.s32 0, %v266
        %v268 = vrot.slane %v263, %v267
        %v302 = vunpack.c.l.b16 %v227
        %v303 = vunpack.c.l.b16 %v228
        %v304 = vunpack.c.l.b16 %v229
        %v305 = vunpack.c.l.b16 %v230
        %v306 = vunpack.c.l.b16 %v231
        %v307 = vunpack.c.l.b16 %v232
        %v308 = vunpack.c.l.b16 %v233
        %v309 = vunpack.c.l.b16 %v234
        %v310 = vunpack.c.l.b16 %v235
        %v311 = vunpack.c.l.b16 %v236
        %v312 = vunpack.c.l.b16 %v237
        %v313 = vunpack.c.l.b16 %v238
        %v314 = vunpack.c.l.b16 %v239
        %v315 = vunpack.c.l.b16 %v240
        %v316 = vunpack.c.l.b16 %v241
        %v317 = vunpack.c.l.b16 %v242
        %v318 = vunpack.c.l.b16 %v243
        %v319 = vunpack.c.l.b16 %v244
        %v320 = vunpack.c.l.b16 %v245
        %v321 = vunpack.c.l.b16 %v246
        %v322 = vunpack.c.l.b16 %v247
        %v323 = vunpack.c.l.b16 %v248
        %v324 = vunpack.c.l.b16 %v249
        %v325 = vunpack.c.l.b16 %v250
        %v326 = vunpack.c.l.b16 %v251
        %v327 = vunpack.c.l.b16 %v252
        %v328 = vunpack.c.l.b16 %v253
        %v329 = vunpack.c.l.b16 %v254
        %v330 = vunpack.c.l.b16 %v255
        %v331 = vunpack.c.l.b16 %v256
        %v332 = vunpack.c.l.b16 %v257
        %v333 = vunpack.c.l.b16 %v258
        %v334 = vpack.c.b16 %v303, %v302
        %v335 = vpack.c.b16 %v305, %v304
        %v336 = vpack.c.b16 %v307, %v306
        %v337 = vpack.c.b16 %v309, %v308
        %v338 = vpack.c.b16 %v311, %v310
        %v339 = vpack.c.b16 %v313, %v312
        %v340 = vpack.c.b16 %v315, %v314
        %v341 = vpack.c.b16 %v317, %v316
        %v342 = vpack.c.b16 %v319, %v318
        %v343 = vpack.c.b16 %v321, %v320
        %v344 = vpack.c.b16 %v323, %v322
        %v345 = vpack.c.b16 %v325, %v324
        %v346 = vpack.c.b16 %v327, %v326
        %v347 = vpack.c.b16 %v329, %v328
        %v348 = vpack.c.b16 %v331, %v330
        %v349 = vpack.c.b16 %v333, %v332
        %v354 = vunpack.c.l.b16 %v259
        %v355 = vunpack.c.l.b16 %v260
        %v356 = vunpack.c.l.b16 %v261
        %v357 = vunpack.c.l.b16 %v262
        %v358 = vpack.c.b16 %v355, %v354
        %v359 = vpack.c.b16 %v357, %v356
        %vm362 = vcmask 261120
        %v364 = vsel %vm362, %v334, 0
        %v367 = vsel %vm362, %v335, 0
        %v370 = vsel %vm362, %v336, 0
        %v373 = vsel %vm362, %v337, 0
        %v376 = vsel %vm362, %v338, 0
        %v379 = vsel %vm362, %v339, 0
        %v382 = vsel %vm362, %v340, 0
        %v385 = vsel %vm362, %v341, 0
        %v388 = vsel %vm362, %v342, 0
        %v391 = vsel %vm362, %v343, 0
        %v394 = vsel %vm362, %v344, 0
        %v397 = vsel %vm362, %v345, 0
        %v400 = vsel %vm362, %v346, 0
        %v403 = vsel %vm362, %v347, 0
        %v406 = vsel %vm362, %v348, 0
        %v409 = vsel %vm362, %v349, 0
        %411 = vmatprep.subr.bf16.mxu0 0
        %412 = vmatpush1.bf16.msra.mxu0 %v358
        %413 = vmatprep.subr.bf16.mxu0 0
        %414 = vmatpush1.bf16.msra.mxu0 %v359
        %415 = vmatprep.subr.bf16.mxu0 0
        %416 = vmatpush1.bf16.msra.mxu0 0
        %417 = vmatprep.subr.bf16.mxu0 0
        %418 = vmatpush1.bf16.msra.mxu0 0
        %419 = vmatprep.subr.bf16.mxu0 0
        %420 = vmatpush1.bf16.msra.mxu0 0
        %421 = vmatprep.subr.bf16.mxu0 0
        %422 = vmatpush1.bf16.msra.mxu0 0
        %423 = vmatprep.subr.bf16.mxu0 0
        %424 = vmatpush1.bf16.msra.mxu0 0
        %425 = vmatprep.subr.bf16.mxu0 0
        %426 = vmatpush1.bf16.msra.mxu0 0
        %427 = vmatprep.subr.bf16.mxu0 0
        %428 = vmatpush1.bf16.msra.mxu0 0
        %429 = vmatprep.subr.bf16.mxu0 0
        %430 = vmatpush1.bf16.msra.mxu0 0
        %431 = vmatprep.subr.bf16.mxu0 0
        %432 = vmatpush1.bf16.msra.mxu0 0
        %433 = vmatprep.subr.bf16.mxu0 0
        %434 = vmatpush1.bf16.msra.mxu0 0
        %435 = vmatprep.subr.bf16.mxu0 0
        %436 = vmatpush1.bf16.msra.mxu0 0
        %437 = vmatprep.subr.bf16.mxu0 0
        %438 = vmatpush1.bf16.msra.mxu0 0
        %439 = vmatprep.subr.bf16.mxu0 0
        %440 = vmatpush1.bf16.msra.mxu0 0
        %441 = vmatprep.subr.bf16.mxu0 0
        %442 = vmatpush1.bf16.msra.mxu0 0
        %443 = vmatprep.mubr.bf16.mxu0 0
        %444 = vmatmul.mubr.bf16.gmra.mrb[0].mxu0 %v364
        %v445 = vpop.f32.mrb[0].mxu0
        %v446 = vadd.f32 %v268, %v445
        %v447 = vpop.f32.mrb[0].mxu0
        %v448 = vpop.f32.mrb[0].mxu0
        %v449 = vadd.f32 %v268, %v448
        %v450 = vpop.f32.mrb[0].mxu0
        %451 = vmatprep.mubr.bf16.mxu0 0
        %452 = vmatmul.mubr.bf16.gmra.mrb[0].mxu0 %v367
        %v453 = vpop.f32.mrb[0].mxu0
        %v454 = vadd.f32 %v268, %v453
        %v455 = vpop.f32.mrb[0].mxu0
        %v456 = vpop.f32.mrb[0].mxu0
        %v457 = vadd.f32 %v268, %v456
        %v458 = vpop.f32.mrb[0].mxu0
        %459 = vmatprep.mubr.bf16.mxu0 0
        %460 = vmatmul.mubr.bf16.gmra.mrb[0].mxu0 %v370
        %v461 = vpop.f32.mrb[0].mxu0
        %v462 = vadd.f32 %v268, %v461
        %v463 = vpop.f32.mrb[0].mxu0
        %v464 = vpop.f32.mrb[0].mxu0
        %v465 = vadd.f32 %v268, %v464
        %v466 = vpop.f32.mrb[0].mxu0
        %467 = vmatprep.mubr.bf16.mxu0 0
        %468 = vmatmul.mubr.bf16.gmra.mrb[0].mxu0 %v373
        %v469 = vpop.f32.mrb[0].mxu0
        %v470 = vadd.f32 %v268, %v469
        %v471 = vpop.f32.mrb[0].mxu0
        %v472 = vpop.f32.mrb[0].mxu0
        %v473 = vadd.f32 %v268, %v472
        %v474 = vpop.f32.mrb[0].mxu0
        %475 = vmatprep.mubr.bf16.mxu0 0
        %476 = vmatmul.mubr.bf16.gmra.mrb[0].mxu0 %v376
        %v477 = vpop.f32.mrb[0].mxu0
        %v478 = vadd.f32 %v268, %v477
        %v479 = vpop.f32.mrb[0].mxu0
        %v480 = vpop.f32.mrb[0].mxu0
        %v481 = vadd.f32 %v268, %v480
        %v482 = vpop.f32.mrb[0].mxu0
        %483 = vmatprep.mubr.bf16.mxu0 0
        %484 = vmatmul.mubr.bf16.gmra.mrb[0].mxu0 %v379
        %v485 = vpop.f32.mrb[0].mxu0
        %v486 = vadd.f32 %v268, %v485
        %v487 = vpop.f32.mrb[0].mxu0
        %v488 = vpop.f32.mrb[0].mxu0
        %v489 = vadd.f32 %v268, %v488
        %v490 = vpop.f32.mrb[0].mxu0
        %491 = vmatprep.mubr.bf16.mxu0 0
        %492 = vmatmul.mubr.bf16.gmra.mrb[0].mxu0 %v382
        %v493 = vpop.f32.mrb[0].mxu0
        %v494 = vadd.f32 %v268, %v493
        %v495 = vpop.f32.mrb[0].mxu0
        %v496 = vpop.f32.mrb[0].mxu0
        %v497 = vadd.f32 %v268, %v496
        %v498 = vpop.f32.mrb[0].mxu0
        %499 = vmatprep.mubr.bf16.mxu0 0
        %500 = vmatmul.mubr.bf16.gmra.mrb[0].mxu0 %v385
        %v501 = vpop.f32.mrb[0].mxu0
        %v502 = vadd.f32 %v268, %v501
        %v503 = vpop.f32.mrb[0].mxu0
        %v504 = vpop.f32.mrb[0].mxu0
        %v505 = vadd.f32 %v268, %v504
        %v506 = vpop.f32.mrb[0].mxu0
        %507 = vmatprep.mubr.bf16.mxu0 0
        %508 = vmatmul.mubr.bf16.gmra.mrb[0].mxu0 %v388
        %v509 = vpop.f32.mrb[0].mxu0
        %v510 = vadd.f32 %v268, %v509
        %v511 = vpop.f32.mrb[0].mxu0
        %v512 = vpop.f32.mrb[0].mxu0
        %v513 = vadd.f32 %v268, %v512
        %v514 = vpop.f32.mrb[0].mxu0
        %515 = vmatprep.mubr.bf16.mxu0 0
        %516 = vmatmul.mubr.bf16.gmra.mrb[0].mxu0 %v391
        %v517 = vpop.f32.mrb[0].mxu0
        %v518 = vadd.f32 %v268, %v517
        %v519 = vpop.f32.mrb[0].mxu0
        %v520 = vpop.f32.mrb[0].mxu0
        %v521 = vadd.f32 %v268, %v520
        %v522 = vpop.f32.mrb[0].mxu0
        %523 = vmatprep.mubr.bf16.mxu0 0
        %524 = vmatmul.mubr.bf16.gmra.mrb[0].mxu0 %v394
        %v525 = vpop.f32.mrb[0].mxu0
        %v526 = vadd.f32 %v268, %v525
        %v527 = vpop.f32.mrb[0].mxu0
        %v528 = vpop.f32.mrb[0].mxu0
        %v529 = vadd.f32 %v268, %v528
        %v530 = vpop.f32.mrb[0].mxu0
        %531 = vmatprep.mubr.bf16.mxu0 0
        %532 = vmatmul.mubr.bf16.gmra.mrb[0].mxu0 %v397
        %v533 = vpop.f32.mrb[0].mxu0
        %v534 = vadd.f32 %v268, %v533
        %v535 = vpop.f32.mrb[0].mxu0
        %v536 = vpop.f32.mrb[0].mxu0
        %v537 = vadd.f32 %v268, %v536
        %v538 = vpop.f32.mrb[0].mxu0
        %539 = vmatprep.mubr.bf16.mxu0 0
        %540 = vmatmul.mubr.bf16.gmra.mrb[0].mxu0 %v400
        %v541 = vpop.f32.mrb[0].mxu0
        %v542 = vadd.f32 %v268, %v541
        %v543 = vpop.f32.mrb[0].mxu0
        %v544 = vpop.f32.mrb[0].mxu0
        %v545 = vadd.f32 %v268, %v544
        %v546 = vpop.f32.mrb[0].mxu0
        %547 = vmatprep.mubr.bf16.mxu0 0
        %548 = vmatmul.mubr.bf16.gmra.mrb[0].mxu0 %v403
        %v549 = vpop.f32.mrb[0].mxu0
        %v550 = vadd.f32 %v268, %v549
        %v551 = vpop.f32.mrb[0].mxu0
        %v552 = vpop.f32.mrb[0].mxu0
        %v553 = vadd.f32 %v268, %v552
        %v554 = vpop.f32.mrb[0].mxu0
        %555 = vmatprep.mubr.bf16.mxu0 0
        %556 = vmatmul.mubr.bf16.gmra.mrb[0].mxu0 %v406
        %v557 = vpop.f32.mrb[0].mxu0
        %v558 = vadd.f32 %v268, %v557
        %v559 = vpop.f32.mrb[0].mxu0
        %v560 = vpop.f32.mrb[0].mxu0
        %v561 = vadd.f32 %v268, %v560
        %v562 = vpop.f32.mrb[0].mxu0
        %563 = vmatprep.mubr.bf16.mxu0 0
        %564 = vmatmul.mubr.bf16.gmra.mrb[0].mxu0 %v409
        %v565 = vpop.f32.mrb[0].mxu0
        %v566 = vadd.f32 %v268, %v565
        %v567 = vpop.f32.mrb[0].mxu0
        %v568 = vpop.f32.mrb[0].mxu0
        %v569 = vadd.f32 %v268, %v568
        %v570 = vpop.f32.mrb[0].mxu0
        %571 = vdwg.mxu0
        %v572 = vtanh.pop %v446
        %v573 = vtanh.pop %v449
        %v574 = vtanh.pop %v454
        %v575 = vtanh.pop %v457
        %v576 = vtanh.pop %v462
        %v577 = vtanh.pop %v465
        %v578 = vtanh.pop %v470
        %v579 = vtanh.pop %v473
        %v580 = vtanh.pop %v478
        %v581 = vtanh.pop %v481
        %v582 = vtanh.pop %v486
        %v583 = vtanh.pop %v489
        %v584 = vtanh.pop %v494
        %v585 = vtanh.pop %v497
        %v586 = vtanh.pop %v502
        %v587 = vtanh.pop %v505
        %v588 = vtanh.pop %v510
        %v589 = vtanh.pop %v513
        %v590 = vtanh.pop %v518
        %v591 = vtanh.pop %v521
        %v592 = vtanh.pop %v526
        %v593 = vtanh.pop %v529
        %v594 = vtanh.pop %v534
        %v595 = vtanh.pop %v537
        %v596 = vtanh.pop %v542
        %v597 = vtanh.pop %v545
        %v598 = vtanh.pop %v550
        %v599 = vtanh.pop %v553
        %v600 = vtanh.pop %v558
        %v601 = vtanh.pop %v561
        %v602 = vtanh.pop %v566
        %v603 = vtanh.pop %v569
        %v604 = vpack.c.bf16 %v573, %v572
        %v605 = vpack.c.bf16 %v575, %v574
        %v606 = vpack.c.bf16 %v577, %v576
        %v607 = vpack.c.bf16 %v579, %v578
        %v608 = vpack.c.bf16 %v581, %v580
        %v609 = vpack.c.bf16 %v583, %v582
        %v610 = vpack.c.bf16 %v585, %v584
        %v611 = vpack.c.bf16 %v587, %v586
        %v612 = vpack.c.bf16 %v589, %v588
        %v613 = vpack.c.bf16 %v591, %v590
        %v614 = vpack.c.bf16 %v593, %v592
        %v615 = vpack.c.bf16 %v595, %v594
        %v616 = vpack.c.bf16 %v597, %v596
        %v617 = vpack.c.bf16 %v599, %v598
        %v618 = vpack.c.bf16 %v601, %v600
        %v619 = vpack.c.bf16 %v603, %v602
        %v620 = vld [vmem:[%s3] sm:$0xf]
        %v621 = vld [vmem:[%s3 + $0x4] sm:$0xf]
        %v622 = vld [vmem:[%s3 + $0x8] sm:$0xf]
        %v623 = vld [vmem:[%s3 + $0xc] sm:$0xf]
        %v624 = vld [vmem:[%s3 + $0x10] sm:$0xf]
        %v625 = vld [vmem:[%s3 + $0x14] sm:$0xf]
        %v626 = vld [vmem:[%s3 + $0x18] sm:$0xf]
        %v627 = vld [vmem:[%s3 + $0x1c] sm:$0xf]
        %v628 = vld [vmem:[%s4] sm:$0x1]
        %v630 = vlaneseq
        %v631 = vshrl.u32 %v630, 7
        %v632 = vsub.s32 0, %v631
        %v633 = vrot.slane %v628, %v632
        %v643 = vunpack.c.l.b16 %v620
        %v644 = vunpack.c.l.b16 %v621
        %v645 = vunpack.c.l.b16 %v622
        %v646 = vunpack.c.l.b16 %v623
        %v647 = vunpack.c.l.b16 %v624
        %v648 = vunpack.c.l.b16 %v625
        %v649 = vunpack.c.l.b16 %v626
        %v650 = vunpack.c.l.b16 %v627
        %v651 = vpack.c.b16 %v644, %v643
        %v652 = vpack.c.b16 %v646, %v645
        %v653 = vpack.c.b16 %v648, %v647
        %v654 = vpack.c.b16 %v650, %v649
        %vm659 = vcmask 523264
        %v661 = vsel %vm659, %v604, 0
        %v664 = vsel %vm659, %v605, 0
        %v667 = vsel %vm659, %v606, 0
        %v670 = vsel %vm659, %v607, 0
        %v673 = vsel %vm659, %v608, 0
        %v676 = vsel %vm659, %v609, 0
        %v679 = vsel %vm659, %v610, 0
        %v682 = vsel %vm659, %v611, 0
        %v685 = vsel %vm659, %v612, 0
        %v688 = vsel %vm659, %v613, 0
        %v691 = vsel %vm659, %v614, 0
        %v694 = vsel %vm659, %v615, 0
        %v697 = vsel %vm659, %v616, 0
        %v700 = vsel %vm659, %v617, 0
        %v703 = vsel %vm659, %v618, 0
        %v706 = vsel %vm659, %v619, 0
        %708 = vmatprep.subr.bf16.mxu0 0
        %709 = vmatpush1.bf16.msra.mxu0 %v651
        %710 = vmatprep.subr.bf16.mxu0 0
        %711 = vmatpush1.bf16.msra.mxu0 %v652
        %712 = vmatprep.subr.bf16.mxu0 0
        %713 = vmatpush1.bf16.msra.mxu0 %v653
        %714 = vmatprep.subr.bf16.mxu0 0
        %715 = vmatpush1.bf16.msra.mxu0 %v654
        %716 = vmatprep.subr.bf16.mxu0 0
        %717 = vmatpush1.bf16.msra.mxu0 0
        %718 = vmatprep.subr.bf16.mxu0 0
        %719 = vmatpush1.bf16.msra.mxu0 0
        %720 = vmatprep.subr.bf16.mxu0 0
        %721 = vmatpush1.bf16.msra.mxu0 0
        %722 = vmatprep.subr.bf16.mxu0 0
        %723 = vmatpush1.bf16.msra.mxu0 0
        %724 = vmatprep.subr.bf16.mxu0 0
        %725 = vmatpush1.bf16.msra.mxu0 0
        %726 = vmatprep.subr.bf16.mxu0 0
        %727 = vmatpush1.bf16.msra.mxu0 0
        %728 = vmatprep.subr.bf16.mxu0 0
        %729 = vmatpush1.bf16.msra.mxu0 0
        %730 = vmatprep.subr.bf16.mxu0 0
        %731 = vmatpush1.bf16.msra.mxu0 0
        %732 = vmatprep.subr.bf16.mxu0 0
        %733 = vmatpush1.bf16.msra.mxu0 0
        %734 = vmatprep.subr.bf16.mxu0 0
        %735 = vmatpush1.bf16.msra.mxu0 0
        %736 = vmatprep.subr.bf16.mxu0 0
        %737 = vmatpush1.bf16.msra.mxu0 0
        %738 = vmatprep.subr.bf16.mxu0 0
        %739 = vmatpush1.bf16.msra.mxu0 0
        %740 = vmatprep.mubr.bf16.mxu0 0
        %741 = vmatmul.mubr.bf16.gmra.mrb[0].mxu0 %v661
        %v742 = vpop.f32.mrb[0].mxu0
        %v743 = vadd.f32 %v633, %v742
        %v744 = vpop.f32.mrb[0].mxu0
        %v745 = vpop.f32.mrb[0].mxu0
        %v746 = vadd.f32 %v633, %v745
        %v747 = vpop.f32.mrb[0].mxu0
        %748 = vmatprep.mubr.bf16.mxu0 0
        %749 = vmatmul.mubr.bf16.gmra.mrb[0].mxu0 %v664
        %v750 = vpop.f32.mrb[0].mxu0
        %v751 = vadd.f32 %v633, %v750
        %v752 = vpop.f32.mrb[0].mxu0
        %v753 = vpop.f32.mrb[0].mxu0
        %v754 = vadd.f32 %v633, %v753
        %v755 = vpop.f32.mrb[0].mxu0
        %756 = vmatprep.mubr.bf16.mxu0 0
        %757 = vmatmul.mubr.bf16.gmra.mrb[0].mxu0 %v667
        %v758 = vpop.f32.mrb[0].mxu0
        %v759 = vadd.f32 %v633, %v758
        %v760 = vpop.f32.mrb[0].mxu0
        %v761 = vpop.f32.mrb[0].mxu0
        %v762 = vadd.f32 %v633, %v761
        %v763 = vpop.f32.mrb[0].mxu0
        %764 = vmatprep.mubr.bf16.mxu0 0
        %765 = vmatmul.mubr.bf16.gmra.mrb[0].mxu0 %v670
        %v766 = vpop.f32.mrb[0].mxu0
        %v767 = vadd.f32 %v633, %v766
        %v768 = vpop.f32.mrb[0].mxu0
        %v769 = vpop.f32.mrb[0].mxu0
        %v770 = vadd.f32 %v633, %v769
        %v771 = vpop.f32.mrb[0].mxu0
        %772 = vmatprep.mubr.bf16.mxu0 0
        %773 = vmatmul.mubr.bf16.gmra.mrb[0].mxu0 %v673
        %v774 = vpop.f32.mrb[0].mxu0
        %v775 = vadd.f32 %v633, %v774
        %v776 = vpop.f32.mrb[0].mxu0
        %v777 = vpop.f32.mrb[0].mxu0
        %v778 = vadd.f32 %v633, %v777
        %v779 = vpop.f32.mrb[0].mxu0
        %780 = vmatprep.mubr.bf16.mxu0 0
        %781 = vmatmul.mubr.bf16.gmra.mrb[0].mxu0 %v676
        %v782 = vpop.f32.mrb[0].mxu0
        %v783 = vadd.f32 %v633, %v782
        %v784 = vpop.f32.mrb[0].mxu0
        %v785 = vpop.f32.mrb[0].mxu0
        %v786 = vadd.f32 %v633, %v785
        %v787 = vpop.f32.mrb[0].mxu0
        %788 = vmatprep.mubr.bf16.mxu0 0
        %789 = vmatmul.mubr.bf16.gmra.mrb[0].mxu0 %v679
        %v790 = vpop.f32.mrb[0].mxu0
        %v791 = vadd.f32 %v633, %v790
        %v792 = vpop.f32.mrb[0].mxu0
        %v793 = vpop.f32.mrb[0].mxu0
        %v794 = vadd.f32 %v633, %v793
        %v795 = vpop.f32.mrb[0].mxu0
        %796 = vmatprep.mubr.bf16.mxu0 0
        %797 = vmatmul.mubr.bf16.gmra.mrb[0].mxu0 %v682
        %v798 = vpop.f32.mrb[0].mxu0
        %v799 = vadd.f32 %v633, %v798
        %v800 = vpop.f32.mrb[0].mxu0
        %v801 = vpop.f32.mrb[0].mxu0
        %v802 = vadd.f32 %v633, %v801
        %v803 = vpop.f32.mrb[0].mxu0
        %804 = vmatprep.mubr.bf16.mxu0 0
        %805 = vmatmul.mubr.bf16.gmra.mrb[0].mxu0 %v685
        %v806 = vpop.f32.mrb[0].mxu0
        %v807 = vadd.f32 %v633, %v806
        %v808 = vpop.f32.mrb[0].mxu0
        %v809 = vpop.f32.mrb[0].mxu0
        %v810 = vadd.f32 %v633, %v809
        %v811 = vpop.f32.mrb[0].mxu0
        %812 = vmatprep.mubr.bf16.mxu0 0
        %813 = vmatmul.mubr.bf16.gmra.mrb[0].mxu0 %v688
        %v814 = vpop.f32.mrb[0].mxu0
        %v815 = vadd.f32 %v633, %v814
        %v816 = vpop.f32.mrb[0].mxu0
        %v817 = vpop.f32.mrb[0].mxu0
        %v818 = vadd.f32 %v633, %v817
        %v819 = vpop.f32.mrb[0].mxu0
        %820 = vmatprep.mubr.bf16.mxu0 0
        %821 = vmatmul.mubr.bf16.gmra.mrb[0].mxu0 %v691
        %v822 = vpop.f32.mrb[0].mxu0
        %v823 = vadd.f32 %v633, %v822
        %v824 = vpop.f32.mrb[0].mxu0
        %v825 = vpop.f32.mrb[0].mxu0
        %v826 = vadd.f32 %v633, %v825
        %v827 = vpop.f32.mrb[0].mxu0
        %828 = vmatprep.mubr.bf16.mxu0 0
        %829 = vmatmul.mubr.bf16.gmra.mrb[0].mxu0 %v694
        %v830 = vpop.f32.mrb[0].mxu0
        %v831 = vadd.f32 %v633, %v830
        %v832 = vpop.f32.mrb[0].mxu0
        %v833 = vpop.f32.mrb[0].mxu0
        %v834 = vadd.f32 %v633, %v833
        %v835 = vpop.f32.mrb[0].mxu0
        %836 = vmatprep.mubr.bf16.mxu0 0
        %837 = vmatmul.mubr.bf16.gmra.mrb[0].mxu0 %v697
        %v838 = vpop.f32.mrb[0].mxu0
        %v839 = vadd.f32 %v633, %v838
        %v840 = vpop.f32.mrb[0].mxu0
        %v841 = vpop.f32.mrb[0].mxu0
        %v842 = vadd.f32 %v633, %v841
        %v843 = vpop.f32.mrb[0].mxu0
        %844 = vmatprep.mubr.bf16.mxu0 0
        %845 = vmatmul.mubr.bf16.gmra.mrb[0].mxu0 %v700
        %v846 = vpop.f32.mrb[0].mxu0
        %v847 = vadd.f32 %v633, %v846
        %v848 = vpop.f32.mrb[0].mxu0
        %v849 = vpop.f32.mrb[0].mxu0
        %v850 = vadd.f32 %v633, %v849
        %v851 = vpop.f32.mrb[0].mxu0
        %852 = vmatprep.mubr.bf16.mxu0 0
        %853 = vmatmul.mubr.bf16.gmra.mrb[0].mxu0 %v703
        %v854 = vpop.f32.mrb[0].mxu0
        %v855 = vadd.f32 %v633, %v854
        %v856 = vpop.f32.mrb[0].mxu0
        %v857 = vpop.f32.mrb[0].mxu0
        %v858 = vadd.f32 %v633, %v857
        %v859 = vpop.f32.mrb[0].mxu0
        %860 = vmatprep.mubr.bf16.mxu0 0
        %861 = vmatmul.mubr.bf16.gmra.mrb[0].mxu0 %v706
        %v862 = vpop.f32.mrb[0].mxu0
        %v863 = vadd.f32 %v633, %v862
        %v864 = vpop.f32.mrb[0].mxu0
        %v865 = vpop.f32.mrb[0].mxu0
        %v866 = vadd.f32 %v633, %v865
        %v867 = vpop.f32.mrb[0].mxu0
        %868 = vdwg.mxu0
        %869 = vst [vmem:[%s218] sm:$0xff] %v743
        %870 = vst [vmem:[%s218 + $0x8] sm:$0xff] %v746
        %871 = vst [vmem:[%s218 + $0x10] sm:$0xff] %v751
        %872 = vst [vmem:[%s218 + $0x18] sm:$0xff] %v754
        %873 = vst [vmem:[%s218 + $0x20] sm:$0xff] %v759
        %874 = vst [vmem:[%s218 + $0x28] sm:$0xff] %v762
        %875 = vst [vmem:[%s218 + $0x30] sm:$0xff] %v767
        %876 = vst [vmem:[%s218 + $0x38] sm:$0xff] %v770
        %877 = vst [vmem:[%s218 + $0x40] sm:$0xff] %v775
        %878 = vst [vmem:[%s218 + $0x48] sm:$0xff] %v778
        %879 = vst [vmem:[%s218 + $0x50] sm:$0xff] %v783
        %880 = vst [vmem:[%s218 + $0x58] sm:$0xff] %v786
        %881 = vst [vmem:[%s218 + $0x60] sm:$0xff] %v791
        %882 = vst [vmem:[%s218 + $0x68] sm:$0xff] %v794
        %883 = vst [vmem:[%s218 + $0x70] sm:$0xff] %v799
        %884 = vst [vmem:[%s218 + $0x78] sm:$0xff] %v802
        %885 = vst [vmem:[%s218 + $0x80] sm:$0xff] %v807
        %886 = vst [vmem:[%s218 + $0x88] sm:$0xff] %v810
        %887 = vst [vmem:[%s218 + $0x90] sm:$0xff] %v815
        %888 = vst [vmem:[%s218 + $0x98] sm:$0xff] %v818
        %889 = vst [vmem:[%s218 + $0xa0] sm:$0xff] %v823
        %890 = vst [vmem:[%s218 + $0xa8] sm:$0xff] %v826
        %891 = vst [vmem:[%s218 + $0xb0] sm:$0xff] %v831
        %892 = vst [vmem:[%s218 + $0xb8] sm:$0xff] %v834
        %893 = vst [vmem:[%s218 + $0xc0] sm:$0xff] %v839
        %894 = vst [vmem:[%s218 + $0xc8] sm:$0xff] %v842
        %895 = vst [vmem:[%s218 + $0xd0] sm:$0xff] %v847
        %896 = vst [vmem:[%s218 + $0xd8] sm:$0xff] %v850
        %897 = vst [vmem:[%s218 + $0xe0] sm:$0xff] %v855
        %898 = vst [vmem:[%s218 + $0xe8] sm:$0xff] %v858
        %899 = vst [vmem:[%s218 + $0xf0] sm:$0xff] %v863
        %900 = vst [vmem:[%s218 + $0xf8] sm:$0xff] %v866
        %s901 = sand.u32 %s137, 1
        %s902 = scalar_lea.sflag [#allocation3], %s901
        %s903 = sand.u32 %s137, 1
        %s904 = smul.addr %s903, 256
        %s905 = scalar_lea.vmem [#allocation2], %s904
        // Predicated region
        $region41: #{tpu_custom_call.1} parent=39 // pred_check
          %p906 = pneg %p147
        $region42: #{tpu_custom_call.1} parent=39 // pred_check_branch
          %908 = sbr.rel (%p906) target = $region44
        $region43: #{tpu_custom_call.1} parent=39 // pred_region
          %s909 = smul.u32 32, %s19
          %s911 = ssub.s32 4096, 4096
          %912 = vsyncadd %s902, %s911
          %s913 = smul.addr %s909, 128
          %s914 = scalar_lea.hbm %s5, %s913
          %s915 = sshll.u32 %s905, 4
          %s916 = int_to_ptr.vmem [resolvable:$true] %s915
          %921 = dma.vmem_to_hbm [thread:$0]  %s916, 4096, %s914, %s902, 128, 128, 8
        $region44: #{tpu_custom_call.1} parent=39 // pred_fallthru
          _
      $region40: #{tpu_custom_call.1} parent=5 // pred_fallthru
        _
      %p922 = scmp.le.s32.totalorder 2, %s14
      // Predicated region
      $region45: #{tpu_custom_call.1} parent=5 // pred_check
        %p923 = pneg %p922
      $region46: #{tpu_custom_call.1} parent=5 // pred_check_branch
        %925 = sbr.rel (%p923) target = $region48
      $region47: #{tpu_custom_call.1} parent=5 // pred_region
        %s926 = ssub.s32 %s14, 2
        // Predicated region
        $region49: #{tpu_custom_call.1} parent=47 // pred_check
          %p927 = pneg %p153
        $region50: #{tpu_custom_call.1} parent=47 // pred_check_branch
          %929 = sbr.rel (%p927) target = $region52
        $region51: #{tpu_custom_call.1} parent=47 // pred_region
          %s930 = sand.u32 %s138, 1
          %s931 = scalar_lea.sflag [#allocation3], %s930
          %s932 = sand.u32 %s138, 1
          %s933 = smul.addr %s932, 256
          %s934 = scalar_lea.vmem [#allocation2], %s933
          %935 = dma.done %s931, 4096
        $region52: #{tpu_custom_call.1} parent=47 // pred_fallthru
          _
      $region48: #{tpu_custom_call.1} parent=5 // pred_fallthru
        _
    $region6: #{tpu_custom_call.1} parent=1 // loop_footer
      %s18 = sadd.s32 1, %s14
    $region7: #{tpu_custom_call.1} parent=1 // loop_footer_branch
      %13 = sbr.rel target = $region3
    $region8: #{tpu_custom_call.1} parent=1 // loop_exit
      _
    %936 = vsyncpa [#allocation3], 1
    %s937 = scalar_lea.sflag [#allocation3], 1
    %938 = vsyncpa %s937, 1

</llo_original>
